<compile_context>
chip_gen: v5e
topology: v5e:2x2
jax: 0.10.0
libtpu: 0.0.40
codegen_flags: <defaults>
</compile_context>

<pallas_src>
import functools
import math

import jax
import jax.numpy as jnp
from jax import lax
from jax.experimental import pallas as pl
from jax.experimental.pallas import tpu as pltpu


def _round_up(x, m):
    return ((x + m - 1) // m) * m


# ----------------------------- Pallas kernel ------------------------------ #
def eirnn_kernel(xin_ref, eff_w_t_ref, w_fc_t_ref, b_fc_ref,
                 out_ref, act_ref, state_ref, prev_ref,
                 *, alpha, ts, unroll):
    """One time-block of the E-I recurrence + block readout.

    xin_ref    : (TS, Bp, Hp)  precomputed x@W_in^T + (b_in+b_rec), zero-padded
    eff_w_t_ref: (Hp, Hp)      (|W_rec|*mask)^T, zero-padded
    w_fc_t_ref : (Hp, Op)      W_fc^T, zero rows past e_size (no lane slice)
    b_fc_ref   : (1, Op)
    out_ref    : (TS, Bp, Op)  readout per step
    act_ref    : (TS, Bp, Hp)  relu(state) per step
    state_ref  : (Bp, Hp)      recurrent state carried across grid steps
    prev_ref   : (Bp, Hp)      relu(state) carried across grid steps
    """
    @pl.when(pl.program_id(0) == 0)
    def _():
        state_ref[...] = jnp.zeros_like(state_ref)
        prev_ref[...] = jnp.zeros_like(prev_ref)

    eff_w_t = eff_w_t_ref[...]                                  # (Hp, Hp)

    def step(t, carry):
        state, out_prev = carry
        # Only the recurrent matmul has a true time dependence.
        total = xin_ref[t] + jnp.dot(out_prev, eff_w_t,
                                     preferred_element_type=jnp.float32)
        if alpha == 1.0:                      # static specialization (dt=None)
            new_state = total
        else:
            new_state = state * (1.0 - alpha) + total * alpha
        # TODO(synk): sigma_rec>0 recurrent noise not added (default config is 0).
        out_t = jnp.maximum(new_state, 0.0)
        act_ref[t] = out_t
        return new_state, out_t

    state, out_prev = lax.fori_loop(0, ts, step,
                                    (state_ref[...], prev_ref[...]),
                                    unroll=unroll)
    state_ref[...] = state
    prev_ref[...] = out_prev

    # Readout for the whole time block: a single lane-dense matmul + store.
    bp = act_ref.shape[1]
    hp = act_ref.shape[2]
    op = out_ref.shape[2]
    acts = act_ref[...].reshape(ts * bp, hp)
    out = jnp.dot(acts, w_fc_t_ref[...],
                  preferred_element_type=jnp.float32) + b_fc_ref[...]
    out_ref[...] = out.reshape(ts, bp, op)


# ------------------------------ wrapper ----------------------------------- #
def net_forward(x, params, e_size, alpha=1.0, time_block=16):
    """x: (seq, batch, input). Returns (out, rnn_activity)."""
    hi = jax.lax.Precision.HIGHEST
    seq_len, batch, _ = x.shape
    hidden = params["w_rec"].shape[0]
    out_size = params["w_fc"].shape[0]

    # Hardware-friendly padded sizes: lanes -> 128, sublanes -> 8 (f32).
    hp = _round_up(hidden, 128)
    op = _round_up(out_size, 128)
    bp = _round_up(batch, 8)
    ts = max(1, min(time_block, seq_len))
    sp = _round_up(seq_len, ts)

    # --- hoisted, non-recurrent work (plain XLA glue) ---
    eff_w = jnp.abs(params["w_rec"]) * params["mask"]            # (H, H)
    xin = (jnp.einsum('sbi,hi->sbh', x, params["w_in"], precision=hi)
           + params["b_in"] + params["b_rec"])                   # (S, B, H)

    # --- zero-pad everything to (8,128)-aligned tiles ---
    xin_p = jnp.zeros((sp, bp, hp), jnp.float32
                      ).at[:seq_len, :batch, :hidden].set(xin)
    eff_w_t_p = jnp.zeros((hp, hp), jnp.float32
                          ).at[:hidden, :hidden].set(eff_w.T)
    w_fc_t_p = jnp.zeros((hp, op), jnp.float32
                         ).at[:e_size, :out_size].set(params["w_fc"].T)
    b_fc_p = jnp.zeros((1, op), jnp.float32).at[0, :out_size].set(params["b_fc"])

    kernel = functools.partial(eirnn_kernel, alpha=alpha, ts=ts,
                               unroll=min(ts, 4))

    # VMEM budget: double-buffered blocks + resident weights + state scratch.
    vmem_bytes = 4 * (2 * ts * bp * hp            # xin blocks
                      + 2 * ts * bp * op          # out blocks
                      + 2 * ts * bp * hp          # act blocks
                      + 2 * (hp * hp + hp * op + op)
                      + 2 * bp * hp)
    vmem_limit = int(min(max(2 * vmem_bytes, 16 << 20), 64 << 20))

    out_p, act_p = pl.pallas_call(
        kernel,
        out_shape=(jax.ShapeDtypeStruct((sp, bp, op), jnp.float32),
                   jax.ShapeDtypeStruct((sp, bp, hp), jnp.float32)),
        grid=(sp // ts,),
        in_specs=[pl.BlockSpec((ts, bp, hp), lambda t: (t, 0, 0)),
                  pl.BlockSpec((hp, hp), lambda t: (0, 0)),
                  pl.BlockSpec((hp, op), lambda t: (0, 0)),
                  pl.BlockSpec((1, op), lambda t: (0, 0))],
        out_specs=(pl.BlockSpec((ts, bp, op), lambda t: (t, 0, 0)),
                   pl.BlockSpec((ts, bp, hp), lambda t: (t, 0, 0))),
        scratch_shapes=[pltpu.VMEM((bp, hp), jnp.float32),
                        pltpu.VMEM((bp, hp), jnp.float32)],
        compiler_params=pltpu.CompilerParams(
            dimension_semantics=("arbitrary",),   # time axis is serial
            vmem_limit_bytes=vmem_limit),
    )(xin_p, eff_w_t_p, w_fc_t_p, b_fc_p)

    return (out_p[:seq_len, :batch, :out_size],
            act_p[:seq_len, :batch, :hidden])


# --------------------- deterministic parameter setup ---------------------- #
def make_params(key, input_size, hidden_size, output_size, e_prop=0.8):
    e_size = int(e_prop * hidden_size)
    i_size = hidden_size - e_size
    k = jax.random.split(key, 6)

    def kaiming_uniform(rng, shape):
        fan_in = shape[1]
        gain = math.sqrt(2.0 / (1.0 + 5.0))          # a=sqrt(5) leaky-relu gain
        bound = gain * math.sqrt(3.0 / fan_in)
        return jax.random.uniform(rng, shape, jnp.float32, -bound, bound)

    # input2h (nn.Linear)
    w_in = kaiming_uniform(k[0], (hidden_size, input_size))
    b_in = jax.random.uniform(k[1], (hidden_size,), jnp.float32,
                              -1.0 / math.sqrt(input_size),
                              1.0 / math.sqrt(input_size))

    # h2h (EIRecLinear): weight + column rescale of excitatory block
    w_rec = kaiming_uniform(k[2], (hidden_size, hidden_size))
    scale = e_size if i_size == 0 else e_size / i_size
    w_rec = w_rec.at[:, :e_size].divide(scale)
    b_rec = jax.random.uniform(k[3], (hidden_size,), jnp.float32,
                               -1.0 / math.sqrt(hidden_size),
                               1.0 / math.sqrt(hidden_size))

    # E/I mask: +1 excitatory columns, -1 inhibitory, zero diagonal.
    # (density=1 'er' graph + full cross-block connectivity => only the
    #  diagonal is pruned, so no graph sampling is needed.)
    col_sign = jnp.concatenate([jnp.ones((e_size,), jnp.float32),
                                -jnp.ones((i_size,), jnp.float32)])
    mask = jnp.tile(col_sign[None, :], (hidden_size, 1))
    mask = mask * (1.0 - jnp.eye(hidden_size, dtype=jnp.float32))

    # fc readout (nn.Linear) on excitatory units only
    w_fc = kaiming_uniform(k[4], (output_size, e_size))
    b_fc = jax.random.uniform(k[5], (output_size,), jnp.float32,
                              -1.0 / math.sqrt(e_size),
                              1.0 / math.sqrt(e_size))

    params = dict(w_in=w_in, b_in=b_in, w_rec=w_rec, b_rec=b_rec,
                  mask=mask, w_fc=w_fc, b_fc=b_fc)
    return params, e_size


# ------------------------- plain-JAX reference ----------------------------- #
def net_forward_ref(x, params, e_size, alpha=1.0):
    hi = jax.lax.Precision.HIGHEST
    eff_w = jnp.abs(params["w_rec"]) * params["mask"]
    seq_len, batch, _ = x.shape
    hidden = params["w_rec"].shape[0]
    state = jnp.zeros((batch, hidden), jnp.float32)
    output = jnp.zeros((batch, hidden), jnp.float32)
    acts, outs = [], []
    for t in range(seq_len):
        total = (jnp.dot(x[t], params["w_in"].T, precision=hi) + params["b_in"]
                 + jnp.dot(output, eff_w.T, precision=hi) + params["b_rec"])
        state = state * (1.0 - alpha) + total * alpha
        output = jnp.maximum(state, 0.0)
        acts.append(output)
        outs.append(jnp.dot(output[:, :e_size], params["w_fc"].T, precision=hi)
                    + params["b_fc"])
    return jnp.stack(outs, 0), jnp.stack(acts, 0)


if __name__ == "__main__":
    # Small shapes consistent with Net(input_size, hidden_size, output_size)
    SEQ, BATCH = 8, 4
    INPUT, HIDDEN, OUTPUT = 8, 40, 4       # e_prop=0.8 -> e_size=32, i_size=8

    key = jax.random.PRNGKey(0)
    kp, kx = jax.random.split(key)
    params, e_size = make_params(kp, INPUT, HIDDEN, OUTPUT, e_prop=0.8)
    x = jax.random.normal(kx, (SEQ, BATCH, INPUT), jnp.float32)

    out, act = jax.block_until_ready(
        net_forward(x, params, e_size, time_block=4))   # grid of 2 time blocks

    out_ref, act_ref = net_forward_ref(x, params, e_size)
    assert out.shape == (SEQ, BATCH, OUTPUT) and act.shape == (SEQ, BATCH, HIDDEN)
    assert jnp.allclose(out, out_ref, atol=1e-4, rtol=1e-4), \
        float(jnp.max(jnp.abs(out - out_ref)))
    assert jnp.allclose(act, act_ref, atol=1e-4, rtol=1e-4), \
        float(jnp.max(jnp.abs(act - act_ref)))
    print("KERNEL_OK")
</pallas_src>

<mosaic_0001>
module attributes {stable_mosaic.version = 11 : i64} {
  func.func @eirnn_kernel(%arg0: i32, %arg1: memref<4x8x128xf32, #tpu.memory_space<vmem>>, %arg2: memref<128x128xf32, #tpu.memory_space<vmem>>, %arg3: memref<128x128xf32, #tpu.memory_space<vmem>>, %arg4: memref<1x128xf32, #tpu.memory_space<vmem>>, %arg5: memref<4x8x128xf32, #tpu.memory_space<vmem>>, %arg6: memref<4x8x128xf32, #tpu.memory_space<vmem>>, %arg7: memref<8x128xf32, #tpu.memory_space<vmem>>, %arg8: memref<8x128xf32, #tpu.memory_space<vmem>>) attributes {dimension_semantics = [#tpu.dimension_semantics<arbitrary>], iteration_bounds = array<i64: 2>, scalar_prefetch = 0 : i64, scratch_operands = 2 : i64, tpu.core_type = #tpu.core_type<tc>, window_params = [{transform_indices = @transform_0, window_bounds = array<i64: 4, 8, 128>}, {pipeline_mode = #tpu.pipeline_mode<synchronous>, transform_indices = @transform_1, window_bounds = array<i64: 128, 128>}, {pipeline_mode = #tpu.pipeline_mode<synchronous>, transform_indices = @transform_2, window_bounds = array<i64: 128, 128>}, {pipeline_mode = #tpu.pipeline_mode<synchronous>, transform_indices = @transform_3, window_bounds = array<i64: 1, 128>}, {transform_indices = @transform_4, window_bounds = array<i64: 4, 8, 128>}, {transform_indices = @transform_5, window_bounds = array<i64: 4, 8, 128>}]} {
    %c0_i32 = arith.constant 0 : i32
    %0 = arith.cmpi eq, %arg0, %c0_i32 : i32
    %1 = arith.extui %0 : i1 to i32
    %c0_i32_0 = arith.constant 0 : i32
    %2 = arith.cmpi ne, %1, %c0_i32_0 : i32
    scf.if %2 {
      %cst_45 = arith.constant 0.000000e+00 : f32
      %61 = vector.broadcast %cst_45 : f32 to vector<8x128xf32>
      %c0_46 = arith.constant 0 : index
      %c0_47 = arith.constant 0 : index
      %62 = vector.load %arg7[%c0_46, %c0_47] : memref<8x128xf32, #tpu.memory_space<vmem>>, vector<8x128xf32>
      tpu.vector_store %arg7[%c0_46, %c0_47], %61 {strides = array<i32>} : memref<8x128xf32, #tpu.memory_space<vmem>>, vector<8x128xf32>,
      %cst_48 = arith.constant 0.000000e+00 : f32
      %63 = vector.broadcast %cst_48 : f32 to vector<8x128xf32>
      %c0_49 = arith.constant 0 : index
      %c0_50 = arith.constant 0 : index
      %64 = vector.load %arg8[%c0_49, %c0_50] : memref<8x128xf32, #tpu.memory_space<vmem>>, vector<8x128xf32>
      tpu.vector_store %arg8[%c0_49, %c0_50], %63 {strides = array<i32>} : memref<8x128xf32, #tpu.memory_space<vmem>>, vector<8x128xf32>,
    } else {
    }
    %c0 = arith.constant 0 : index
    %c0_1 = arith.constant 0 : index
    %3 = vector.load %arg2[%c0, %c0_1] : memref<128x128xf32, #tpu.memory_space<vmem>>, vector<128x128xf32>
    %c0_2 = arith.constant 0 : index
    %c0_3 = arith.constant 0 : index
    %4 = vector.load %arg7[%c0_2, %c0_3] : memref<8x128xf32, #tpu.memory_space<vmem>>, vector<8x128xf32>
    %c0_4 = arith.constant 0 : index
    %c0_5 = arith.constant 0 : index
    %5 = vector.load %arg8[%c0_4, %c0_5] : memref<8x128xf32, #tpu.memory_space<vmem>>, vector<8x128xf32>
    %c0_i32_6 = arith.constant 0 : i32
    %6 = arith.index_cast %c0_i32_6 : i32 to index
    %c0_7 = arith.constant 0 : index
    %c0_8 = arith.constant 0 : index
    %7 = vector.load %arg1[%6, %c0_7, %c0_8] : memref<4x8x128xf32, #tpu.memory_space<vmem>>, vector<1x8x128xf32>
    %8 = vector.shape_cast %7 : vector<1x8x128xf32> to vector<8x128xf32>
    %cst = arith.constant dense<0.000000e+00> : vector<8x128xf32>
    %9 = tpu.matmul %5, %3, %cst {dimension_numbers = #tpu.dot_dimension_numbers<[1], [0], [0], [1], [0, 0, 1, 1], [], []>} : vector<8x128xf32>, vector<128x128xf32>, vector<8x128xf32> -> vector<8x128xf32>
    %10 = arith.addf %8, %9 : vector<8x128xf32>
    %cst_9 = arith.constant 0.000000e+00 : f32
    %11 = vector.broadcast %cst_9 : f32 to vector<8x128xf32>
    %12 = arith.maximumf %10, %11 : vector<8x128xf32>
    %13 = arith.index_cast %c0_i32_6 : i32 to index
    %c0_10 = arith.constant 0 : index
    %c0_11 = arith.constant 0 : index
    %14 = vector.load %arg6[%13, %c0_10, %c0_11] : memref<4x8x128xf32, #tpu.memory_space<vmem>>, vector<1x8x128xf32>
    %15 = vector.shape_cast %14 : vector<1x8x128xf32> to vector<8x128xf32>
    %16 = vector.shape_cast %12 : vector<8x128xf32> to vector<1x8x128xf32>
    tpu.vector_store %arg6[%13, %c0_10, %c0_11], %16 {strides = array<i32>} : memref<4x8x128xf32, #tpu.memory_space<vmem>>, vector<1x8x128xf32>,
    %c1_i32 = arith.constant 1 : i32
    %17 = arith.index_cast %c1_i32 : i32 to index
    %c0_12 = arith.constant 0 : index
    %c0_13 = arith.constant 0 : index
    %18 = vector.load %arg1[%17, %c0_12, %c0_13] : memref<4x8x128xf32, #tpu.memory_space<vmem>>, vector<1x8x128xf32>
    %19 = vector.shape_cast %18 : vector<1x8x128xf32> to vector<8x128xf32>
    %cst_14 = arith.constant dense<0.000000e+00> : vector<8x128xf32>
    %20 = tpu.matmul %12, %3, %cst_14 {dimension_numbers = #tpu.dot_dimension_numbers<[1], [0], [0], [1], [0, 0, 1, 1], [], []>} : vector<8x128xf32>, vector<128x128xf32>, vector<8x128xf32> -> vector<8x128xf32>
    %21 = arith.addf %19, %20 : vector<8x128xf32>
    %cst_15 = arith.constant 0.000000e+00 : f32
    %22 = vector.broadcast %cst_15 : f32 to vector<8x128xf32>
    %23 = arith.maximumf %21, %22 : vector<8x128xf32>
    %24 = arith.index_cast %c1_i32 : i32 to index
    %c0_16 = arith.constant 0 : index
    %c0_17 = arith.constant 0 : index
    %25 = vector.load %arg6[%24, %c0_16, %c0_17] : memref<4x8x128xf32, #tpu.memory_space<vmem>>, vector<1x8x128xf32>
    %26 = vector.shape_cast %25 : vector<1x8x128xf32> to vector<8x128xf32>
    %27 = vector.shape_cast %23 : vector<8x128xf32> to vector<1x8x128xf32>
    tpu.vector_store %arg6[%24, %c0_16, %c0_17], %27 {strides = array<i32>} : memref<4x8x128xf32, #tpu.memory_space<vmem>>, vector<1x8x128xf32>,
    %c2_i32 = arith.constant 2 : i32
    %28 = arith.index_cast %c2_i32 : i32 to index
    %c0_18 = arith.constant 0 : index
    %c0_19 = arith.constant 0 : index
    %29 = vector.load %arg1[%28, %c0_18, %c0_19] : memref<4x8x128xf32, #tpu.memory_space<vmem>>, vector<1x8x128xf32>
    %30 = vector.shape_cast %29 : vector<1x8x128xf32> to vector<8x128xf32>
    %cst_20 = arith.constant dense<0.000000e+00> : vector<8x128xf32>
    %31 = tpu.matmul %23, %3, %cst_20 {dimension_numbers = #tpu.dot_dimension_numbers<[1], [0], [0], [1], [0, 0, 1, 1], [], []>} : vector<8x128xf32>, vector<128x128xf32>, vector<8x128xf32> -> vector<8x128xf32>
    %32 = arith.addf %30, %31 : vector<8x128xf32>
    %cst_21 = arith.constant 0.000000e+00 : f32
    %33 = vector.broadcast %cst_21 : f32 to vector<8x128xf32>
    %34 = arith.maximumf %32, %33 : vector<8x128xf32>
    %35 = arith.index_cast %c2_i32 : i32 to index
    %c0_22 = arith.constant 0 : index
    %c0_23 = arith.constant 0 : index
    %36 = vector.load %arg6[%35, %c0_22, %c0_23] : memref<4x8x128xf32, #tpu.memory_space<vmem>>, vector<1x8x128xf32>
    %37 = vector.shape_cast %36 : vector<1x8x128xf32> to vector<8x128xf32>
    %38 = vector.shape_cast %34 : vector<8x128xf32> to vector<1x8x128xf32>
    tpu.vector_store %arg6[%35, %c0_22, %c0_23], %38 {strides = array<i32>} : memref<4x8x128xf32, #tpu.memory_space<vmem>>, vector<1x8x128xf32>,
    %c3_i32 = arith.constant 3 : i32
    %39 = arith.index_cast %c3_i32 : i32 to index
    %c0_24 = arith.constant 0 : index
    %c0_25 = arith.constant 0 : index
    %40 = vector.load %arg1[%39, %c0_24, %c0_25] : memref<4x8x128xf32, #tpu.memory_space<vmem>>, vector<1x8x128xf32>
    %41 = vector.shape_cast %40 : vector<1x8x128xf32> to vector<8x128xf32>
    %cst_26 = arith.constant dense<0.000000e+00> : vector<8x128xf32>
    %42 = tpu.matmul %34, %3, %cst_26 {dimension_numbers = #tpu.dot_dimension_numbers<[1], [0], [0], [1], [0, 0, 1, 1], [], []>} : vector<8x128xf32>, vector<128x128xf32>, vector<8x128xf32> -> vector<8x128xf32>
    %43 = arith.addf %41, %42 : vector<8x128xf32>
    %cst_27 = arith.constant 0.000000e+00 : f32
    %44 = vector.broadcast %cst_27 : f32 to vector<8x128xf32>
    %45 = arith.maximumf %43, %44 : vector<8x128xf32>
    %46 = arith.index_cast %c3_i32 : i32 to index
    %c0_28 = arith.constant 0 : index
    %c0_29 = arith.constant 0 : index
    %47 = vector.load %arg6[%46, %c0_28, %c0_29] : memref<4x8x128xf32, #tpu.memory_space<vmem>>, vector<1x8x128xf32>
    %48 = vector.shape_cast %47 : vector<1x8x128xf32> to vector<8x128xf32>
    %49 = vector.shape_cast %45 : vector<8x128xf32> to vector<1x8x128xf32>
    tpu.vector_store %arg6[%46, %c0_28, %c0_29], %49 {strides = array<i32>} : memref<4x8x128xf32, #tpu.memory_space<vmem>>, vector<1x8x128xf32>,
    %c4_i32 = arith.constant 4 : i32
    %c0_30 = arith.constant 0 : index
    %c0_31 = arith.constant 0 : index
    %50 = vector.load %arg7[%c0_30, %c0_31] : memref<8x128xf32, #tpu.memory_space<vmem>>, vector<8x128xf32>
    tpu.vector_store %arg7[%c0_30, %c0_31], %43 {strides = array<i32>} : memref<8x128xf32, #tpu.memory_space<vmem>>, vector<8x128xf32>,
    %c0_32 = arith.constant 0 : index
    %c0_33 = arith.constant 0 : index
    %51 = vector.load %arg8[%c0_32, %c0_33] : memref<8x128xf32, #tpu.memory_space<vmem>>, vector<8x128xf32>
    tpu.vector_store %arg8[%c0_32, %c0_33], %45 {strides = array<i32>} : memref<8x128xf32, #tpu.memory_space<vmem>>, vector<8x128xf32>,
    %c0_34 = arith.constant 0 : index
    %c0_35 = arith.constant 0 : index
    %c0_36 = arith.constant 0 : index
    %52 = vector.load %arg6[%c0_34, %c0_35, %c0_36] : memref<4x8x128xf32, #tpu.memory_space<vmem>>, vector<4x8x128xf32>
    %53 = vector.shape_cast %52 : vector<4x8x128xf32> to vector<32x128xf32>
    %c0_37 = arith.constant 0 : index
    %c0_38 = arith.constant 0 : index
    %54 = vector.load %arg3[%c0_37, %c0_38] : memref<128x128xf32, #tpu.memory_space<vmem>>, vector<128x128xf32>
    %cst_39 = arith.constant dense<0.000000e+00> : vector<32x128xf32>
    %55 = tpu.matmul %53, %54, %cst_39 {dimension_numbers = #tpu.dot_dimension_numbers<[1], [0], [0], [1], [0, 0, 1, 1], [], []>} : vector<32x128xf32>, vector<128x128xf32>, vector<32x128xf32> -> vector<32x128xf32>
    %c0_40 = arith.constant 0 : index
    %c0_41 = arith.constant 0 : index
    %56 = vector.load %arg4[%c0_40, %c0_41] : memref<1x128xf32, #tpu.memory_space<vmem>>, vector<1x128xf32>
    %57 = vector.broadcast %56 : vector<1x128xf32> to vector<32x128xf32>
    %58 = arith.addf %55, %57 : vector<32x128xf32>
    %59 = vector.shape_cast %58 : vector<32x128xf32> to vector<4x8x128xf32>
    %c0_42 = arith.constant 0 : index
    %c0_43 = arith.constant 0 : index
    %c0_44 = arith.constant 0 : index
    %60 = vector.load %arg5[%c0_42, %c0_43, %c0_44] : memref<4x8x128xf32, #tpu.memory_space<vmem>>, vector<4x8x128xf32>
    tpu.vector_store %arg5[%c0_42, %c0_43, %c0_44], %59 {strides = array<i32>} : memref<4x8x128xf32, #tpu.memory_space<vmem>>, vector<4x8x128xf32>,
    return
  }
  func.func @transform_0(%arg0: i32) -> (i32, i32, i32) {
    %c0_i32 = arith.constant 0 : i32
    %c0_i32_0 = arith.constant 0 : i32
    %c0_i32_1 = arith.constant 0 : i32
    return %arg0, %c0_i32, %c0_i32_0 : i32, i32, i32
  }
  func.func @transform_1(%arg0: i32) -> (i32, i32) {
    %c0_i32 = arith.constant 0 : i32
    %c0_i32_0 = arith.constant 0 : i32
    %c0_i32_1 = arith.constant 0 : i32
    return %c0_i32, %c0_i32_0 : i32, i32
  }
  func.func @transform_2(%arg0: i32) -> (i32, i32) {
    %c0_i32 = arith.constant 0 : i32
    %c0_i32_0 = arith.constant 0 : i32
    %c0_i32_1 = arith.constant 0 : i32
    return %c0_i32, %c0_i32_0 : i32, i32
  }
  func.func @transform_3(%arg0: i32) -> (i32, i32) {
    %c0_i32 = arith.constant 0 : i32
    %c0_i32_0 = arith.constant 0 : i32
    %c0_i32_1 = arith.constant 0 : i32
    return %c0_i32, %c0_i32_0 : i32, i32
  }
  func.func @transform_4(%arg0: i32) -> (i32, i32, i32) {
    %c0_i32 = arith.constant 0 : i32
    %c0_i32_0 = arith.constant 0 : i32
    %c0_i32_1 = arith.constant 0 : i32
    return %arg0, %c0_i32, %c0_i32_0 : i32, i32, i32
  }
  func.func @transform_5(%arg0: i32) -> (i32, i32, i32) {
    %c0_i32 = arith.constant 0 : i32
    %c0_i32_0 = arith.constant 0 : i32
    %c0_i32_1 = arith.constant 0 : i32
    return %arg0, %c0_i32, %c0_i32_0 : i32, i32, i32
  }
}

</mosaic_0001>

<llo_original>
// kernel: tpu_custom_call.1
$region0: #{tpu_custom_call.1}
  #allocation0 [shape = 'u32[]', space=smem, size = 0x4, offset = 0x4, fixed_abs, tag = 'smem constant byte address 0x4 - core index']
  #allocation1 [shape = 'u32[72,128]{1,0:T(1,128)}', space=vmem, size = 0x9000, scoped, tag = 'internal scratch']
  #allocation2 [shape = 'f32[8,128]{1,0:T(8,128)}', space=vmem, size = 0x1000, scoped, tag = 'scratch operand']
  #allocation3 [shape = 'f32[8,128]{1,0:T(8,128)}', space=vmem, size = 0x1000, scoped, tag = 'scratch operand']
  %s0 = inlined_call_operand.hbm [shape: f32[8,8,128], index: 0, kind: input, shape index: {}]
  %s1 = inlined_call_operand.hbm [shape: f32[128,128], index: 1, kind: input, shape index: {}]
  %s2 = inlined_call_operand.hbm [shape: f32[128,128], index: 2, kind: input, shape index: {}]
  %s3 = inlined_call_operand.vmem [shape: f32[1,128], index: 3, kind: input, shape index: {}]
  %s4 = inlined_call_operand.hbm [shape: f32[8,8,128], index: 4, kind: output, shape index: {0}]
  %s5 = inlined_call_operand.hbm [shape: f32[8,8,128], index: 5, kind: output, shape index: {1}]
  %6 = xla_tuple %s4, %s5
  %s7 = sld [smem:[#allocation0]]
  $region73: #{tpu_custom_call.1} parent=0
    _
  %s9 = ssub.s32 1, %s7
  %s10 = scalar_select 0, %s9, %s7
  $region1: #{tpu_custom_call.1} parent=0
    #allocation4 [shape = 'u8[32768]{0}', space=vmem, size = 0x8000, scoped, tag = 'input window, operand 0']
    #allocation5 [shape = 's32[2]{0}', space=sflag, size = 0x8, scoped, tag = 'scoped memory for tpu_custom_call.1']
    #allocation6 [shape = 's32[2]{0}', space=sflag, size = 0x8, scoped, tag = 'scoped memory for tpu_custom_call.1']
    #allocation7 [shape = 'u8[65536]{0}', space=vmem, size = 0x10000, scoped, tag = 'input window, operand 1, single buffered']
    #allocation8 [shape = 's32[1]{0}', space=sflag, size = 0x4, scoped, tag = 'scoped memory for tpu_custom_call.1']
    #allocation9 [shape = 'u8[65536]{0}', space=vmem, size = 0x10000, scoped, tag = 'input window, operand 2, single buffered']
    #allocation10 [shape = 'u8[32768]{0}', space=vmem, size = 0x8000, scoped, tag = 'output window, operand 0']
    #allocation11 [shape = 'u8[32768]{0}', space=vmem, size = 0x8000, scoped, tag = 'output window, operand 1']
    #allocation12 [shape = 's32[2]{0}', space=sflag, size = 0x8, scoped, tag = 'scoped memory for tpu_custom_call.1']
    %11 = vsyncpa [#allocation5], 0
    %s12 = scalar_lea.sflag [#allocation5], 1
    %13 = vsyncpa %s12, 0
    %14 = vsyncpa [#allocation8], 0
    %15 = vsyncpa [#allocation6], 0
    %s16 = scalar_lea.sflag [#allocation6], 1
    %17 = vsyncpa %s16, 0
    %18 = vsyncpa [#allocation12], 0
    %s19 = scalar_lea.sflag [#allocation12], 1
    %20 = vsyncpa %s19, 0
    loop: start=0, step=1, limit=4
    $region2: #{tpu_custom_call.1} parent=1 // loop_pre_header
      _
    $region3: #{tpu_custom_call.1} parent=1 // loop_header
      %s22 = sphi 0, %s26
      %p23 = scmp.ge.s32.totalorder %s22, 4
      %s32 = sphi 0, %s34
      %s35 = sphi 0, %s32
      %s36 = sphi 0, %s35
      %s52 = sphi 0, %s36
      %s56 = sphi 0, %s56
      %s58 = sphi 0, %s56
      %s59 = sphi 0, %s58
      %s73 = sphi 0, %s59
      %s77 = sphi 0, %s77
      %s79 = sphi 0, %s77
      %s80 = sphi 0, %s79
      %s94 = sphi 0, %s80
      %s98 = sphi 0, %s98
      %s100 = sphi 0, %s98
      %s101 = sphi 0, %s100
      %s115 = sphi 0, %s101
      %s121 = sphi 0, %s123
      %s124 = sphi 0, %s121
      %s125 = sphi 0, %s124
      %s141 = sphi 0, %s125
      %s147 = sphi 0, %s149
      %s150 = sphi 0, %s147
      %s151 = sphi 0, %s150
      %s167 = sphi 0, %s151
    $region4: #{tpu_custom_call.1} parent=1 // loop_header_branch
      %25 = sbr.rel (%p23) target = $region8
    $region5: #{tpu_custom_call.1} parent=1 // loop_body
      %s27 = ssub.s32 %s22, 1
      %s28 = ssub.s32 %s22, 2
      %s29 = sadd.s32 %s22, 1
      %s30 = ssub.s32 %s22, %s29
      %p31 = scmp.eq.s32.totalorder %s30, 0
      %s33 = sadd.s32 %s32, 1
      %s34 = scalar_select %p31, %s32, %s33
      %p37 = pneg %p31
      %p38 = scmp.eq.s32.totalorder %s22, 1
      %p39 = por %p37, %p38
      %p40 = scmp.ne.s32.totalorder %s32, %s35
      %p41 = scmp.eq.s32.totalorder %s22, 0
      %p42 = por %p40, %p41
      %p43 = scmp.ne.s32.totalorder %s32, %s35
      %p44 = scmp.eq.s32.totalorder %s27, 1
      %p45 = por %p43, %p44
      %p46 = scmp.ne.s32.totalorder %s35, %s36
      %p47 = scmp.eq.s32.totalorder %s27, 0
      %p48 = por %p46, %p47
      %p49 = scmp.ne.s32.totalorder %s35, %s36
      %p50 = scmp.eq.s32.totalorder %s28, 1
      %p51 = por %p49, %p50
      %p53 = scmp.ne.s32.totalorder %s36, %s52
      %p54 = scmp.eq.s32.totalorder %s28, 0
      %p55 = por %p53, %p54
      %s57 = sadd.s32 %s56, 1
      %p60 = scmp.eq.s32.totalorder %s22, 1
      %p61 = scmp.ne.s32.totalorder %s56, %s58
      %p62 = scmp.eq.s32.totalorder %s22, 0
      %p63 = por %p61, %p62
      %p64 = scmp.ne.s32.totalorder %s56, %s58
      %p65 = scmp.eq.s32.totalorder %s27, 1
      %p66 = por %p64, %p65
      %p67 = scmp.ne.s32.totalorder %s58, %s59
      %p68 = scmp.eq.s32.totalorder %s27, 0
      %p69 = por %p67, %p68
      %p70 = scmp.ne.s32.totalorder %s58, %s59
      %p71 = scmp.eq.s32.totalorder %s28, 1
      %p72 = por %p70, %p71
      %p74 = scmp.ne.s32.totalorder %s59, %s73
      %p75 = scmp.eq.s32.totalorder %s28, 0
      %p76 = por %p74, %p75
      %s78 = sadd.s32 %s77, 1
      %p81 = scmp.eq.s32.totalorder %s22, 1
      %p82 = scmp.ne.s32.totalorder %s77, %s79
      %p83 = scmp.eq.s32.totalorder %s22, 0
      %p84 = por %p82, %p83
      %p85 = scmp.ne.s32.totalorder %s77, %s79
      %p86 = scmp.eq.s32.totalorder %s27, 1
      %p87 = por %p85, %p86
      %p88 = scmp.ne.s32.totalorder %s79, %s80
      %p89 = scmp.eq.s32.totalorder %s27, 0
      %p90 = por %p88, %p89
      %p91 = scmp.ne.s32.totalorder %s79, %s80
      %p92 = scmp.eq.s32.totalorder %s28, 1
      %p93 = por %p91, %p92
      %p95 = scmp.ne.s32.totalorder %s80, %s94
      %p96 = scmp.eq.s32.totalorder %s28, 0
      %p97 = por %p95, %p96
      %s99 = sadd.s32 %s98, 1
      %p102 = scmp.eq.s32.totalorder %s22, 1
      %p103 = scmp.ne.s32.totalorder %s98, %s100
      %p104 = scmp.eq.s32.totalorder %s22, 0
      %p105 = por %p103, %p104
      %p106 = scmp.ne.s32.totalorder %s98, %s100
      %p107 = scmp.eq.s32.totalorder %s27, 1
      %p108 = por %p106, %p107
      %p109 = scmp.ne.s32.totalorder %s100, %s101
      %p110 = scmp.eq.s32.totalorder %s27, 0
      %p111 = por %p109, %p110
      %p112 = scmp.ne.s32.totalorder %s100, %s101
      %p113 = scmp.eq.s32.totalorder %s28, 1
      %p114 = por %p112, %p113
      %p116 = scmp.ne.s32.totalorder %s101, %s115
      %p117 = scmp.eq.s32.totalorder %s28, 0
      %p118 = por %p116, %p117
      %s119 = ssub.s32 %s22, %s29
      %p120 = scmp.eq.s32.totalorder %s119, 0
      %s122 = sadd.s32 %s121, 1
      %s123 = scalar_select %p120, %s121, %s122
      %p126 = pneg %p120
      %p127 = scmp.eq.s32.totalorder %s22, 1
      %p128 = por %p126, %p127
      %p129 = scmp.ne.s32.totalorder %s121, %s124
      %p130 = scmp.eq.s32.totalorder %s22, 0
      %p131 = por %p129, %p130
      %p132 = scmp.ne.s32.totalorder %s121, %s124
      %p133 = scmp.eq.s32.totalorder %s27, 1
      %p134 = por %p132, %p133
      %p135 = scmp.ne.s32.totalorder %s124, %s125
      %p136 = scmp.eq.s32.totalorder %s27, 0
      %p137 = por %p135, %p136
      %p138 = scmp.ne.s32.totalorder %s124, %s125
      %p139 = scmp.eq.s32.totalorder %s28, 1
      %p140 = por %p138, %p139
      %p142 = scmp.ne.s32.totalorder %s125, %s141
      %p143 = scmp.eq.s32.totalorder %s28, 0
      %p144 = por %p142, %p143
      %s145 = ssub.s32 %s22, %s29
      %p146 = scmp.eq.s32.totalorder %s145, 0
      %s148 = sadd.s32 %s147, 1
      %s149 = scalar_select %p146, %s147, %s148
      %p152 = pneg %p146
      %p153 = scmp.eq.s32.totalorder %s22, 1
      %p154 = por %p152, %p153
      %p155 = scmp.ne.s32.totalorder %s147, %s150
      %p156 = scmp.eq.s32.totalorder %s22, 0
      %p157 = por %p155, %p156
      %p158 = scmp.ne.s32.totalorder %s147, %s150
      %p159 = scmp.eq.s32.totalorder %s27, 1
      %p160 = por %p158, %p159
      %p161 = scmp.ne.s32.totalorder %s150, %s151
      %p162 = scmp.eq.s32.totalorder %s27, 0
      %p163 = por %p161, %p162
      %p164 = scmp.ne.s32.totalorder %s150, %s151
      %p165 = scmp.eq.s32.totalorder %s28, 1
      %p166 = por %p164, %p165
      %p168 = scmp.ne.s32.totalorder %s151, %s167
      %p169 = scmp.eq.s32.totalorder %s28, 0
      %p170 = por %p168, %p169
      %p171 = scmp.le.s32.totalorder 1, %s22
      %p172 = scmp.lt.s32.totalorder %s22, 3
      %p173 = pnand %p171, %p172
      %p174 = pneg %p173
      // Predicated region
      $region9: #{tpu_custom_call.1} parent=5 // pred_check
        _
      $region10: #{tpu_custom_call.1} parent=5 // pred_check_branch
        %176 = sbr.rel (%p173) target = $region12
      $region11: #{tpu_custom_call.1} parent=5 // pred_region
        %s177 = ssub.s32 %s22, 1
        // Predicated region
        $region13: #{tpu_custom_call.1} parent=11 // pred_check
          %p178 = pneg %p69
        $region14: #{tpu_custom_call.1} parent=11 // pred_check_branch
          %180 = sbr.rel (%p178) target = $region16
        $region15: #{tpu_custom_call.1} parent=11 // pred_region
          %182 = vsyncadd [#allocation8], 0
          %s183 = sshll.u32 %s1, 4
          %s184 = int_to_ptr.hbm [resolvable:$true] %s183
          %s185 = sshll.u32 [#allocation7], 4
          %s186 = int_to_ptr.vmem [resolvable:$true] %s185
          %191 = dma.hbm_to_vmem [thread:$0]  %s184, 2048, %s186, [#allocation8], 128, 128, 8
        $region16: #{tpu_custom_call.1} parent=11 // pred_fallthru
          _
        // Predicated region
        $region17: #{tpu_custom_call.1} parent=11 // pred_check
          %p192 = pneg %p90
        $region18: #{tpu_custom_call.1} parent=11 // pred_check_branch
          %194 = sbr.rel (%p192) target = $region20
        $region19: #{tpu_custom_call.1} parent=11 // pred_region
          %196 = vsyncadd [#allocation8], 0
          %s197 = sshll.u32 %s2, 4
          %s198 = int_to_ptr.hbm [resolvable:$true] %s197
          %s199 = sshll.u32 [#allocation9], 4
          %s200 = int_to_ptr.vmem [resolvable:$true] %s199
          %205 = dma.hbm_to_vmem [thread:$0]  %s198, 2048, %s200, [#allocation8], 128, 128, 8
        $region20: #{tpu_custom_call.1} parent=11 // pred_fallthru
          _
        // Predicated region
        $region21: #{tpu_custom_call.1} parent=11 // pred_check
          %p206 = pneg %p111
        $region22: #{tpu_custom_call.1} parent=11 // pred_check_branch
          %208 = sbr.rel (%p206) target = $region24
        $region23: #{tpu_custom_call.1} parent=11 // pred_region
          _
        $region24: #{tpu_custom_call.1} parent=11 // pred_fallthru
          _
      $region12: #{tpu_custom_call.1} parent=5 // pred_fallthru
        _
      %p209 = scmp.lt.s32.totalorder %s22, 2
      // Predicated region
      $region25: #{tpu_custom_call.1} parent=5 // pred_check
        %p210 = pneg %p209
      $region26: #{tpu_custom_call.1} parent=5 // pred_check_branch
        %212 = sbr.rel (%p210) target = $region28
      $region27: #{tpu_custom_call.1} parent=5 // pred_region
        // Predicated region
        $region29: #{tpu_custom_call.1} parent=27 // pred_check
          %p213 = pneg %p42
        $region30: #{tpu_custom_call.1} parent=27 // pred_check_branch
          %215 = sbr.rel (%p213) target = $region32
        $region31: #{tpu_custom_call.1} parent=27 // pred_region
          %s216 = sand.u32 %s32, 1
          %s217 = scalar_lea.sflag [#allocation5], %s216
          %s218 = sand.u32 %s32, 1
          %s219 = smul.addr %s218, 32
          %s220 = scalar_lea.vmem [#allocation4], %s219
          %s221 = smul.u32 4, %s22
          %223 = vsyncadd %s217, 0
          %s224 = smul.addr %s221, 8
          %s225 = scalar_lea.hbm %s0, %s224
          %s226 = sshll.u32 %s225, 4
          %s227 = int_to_ptr.hbm [resolvable:$true] %s226
          %s228 = sshll.u32 %s220, 4
          %s229 = int_to_ptr.vmem [resolvable:$true] %s228
          %234 = dma.hbm_to_vmem [thread:$0]  %s227, 512, %s229, %s217, 128, 128, 8
        $region32: #{tpu_custom_call.1} parent=27 // pred_fallthru
          _
      $region28: #{tpu_custom_call.1} parent=5 // pred_fallthru
        _
      %p235 = scmp.le.s32.totalorder 1, %s22
      %p236 = scmp.lt.s32.totalorder %s22, 3
      %p237 = pnand %p235, %p236
      %p238 = pneg %p237
      // Predicated region
      $region33: #{tpu_custom_call.1} parent=5 // pred_check
        _
      $region34: #{tpu_custom_call.1} parent=5 // pred_check_branch
        %240 = sbr.rel (%p237) target = $region36
      $region35: #{tpu_custom_call.1} parent=5 // pred_region
        %s241 = ssub.s32 %s22, 1
        %s242 = sand.u32 %s35, 1
        %s243 = scalar_lea.sflag [#allocation5], %s242
        %s244 = sand.u32 %s35, 1
        %s245 = smul.addr %s244, 32
        %s246 = scalar_lea.vmem [#allocation4], %s245
        // Predicated region
        $region37: #{tpu_custom_call.1} parent=35 // pred_check
          %p247 = pneg %p48
        $region38: #{tpu_custom_call.1} parent=35 // pred_check_branch
          %249 = sbr.rel (%p247) target = $region40
        $region39: #{tpu_custom_call.1} parent=35 // pred_region
          %251 = dma.done %s243, 512
        $region40: #{tpu_custom_call.1} parent=35 // pred_fallthru
          _
        // Predicated region
        $region41: #{tpu_custom_call.1} parent=35 // pred_check
          %p252 = pneg %p69
        $region42: #{tpu_custom_call.1} parent=35 // pred_check_branch
          %254 = sbr.rel (%p252) target = $region44
        $region43: #{tpu_custom_call.1} parent=35 // pred_region
          %256 = dma.done [#allocation8], 2048
        $region44: #{tpu_custom_call.1} parent=35 // pred_fallthru
          _
        // Predicated region
        $region45: #{tpu_custom_call.1} parent=35 // pred_check
          %p257 = pneg %p90
        $region46: #{tpu_custom_call.1} parent=35 // pred_check_branch
          %259 = sbr.rel (%p257) target = $region48
        $region47: #{tpu_custom_call.1} parent=35 // pred_region
          %261 = dma.done [#allocation8], 2048
        $region48: #{tpu_custom_call.1} parent=35 // pred_fallthru
          _
        %s262 = sand.u32 %s35, 1
        %s263 = scalar_lea.sflag [#allocation5], %s262
        %s264 = sand.u32 %s35, 1
        %s265 = smul.addr %s264, 32
        %s266 = scalar_lea.vmem [#allocation4], %s265
        %p267 = pneg %p48
        %p268 = pneg %p45
        %p269 = pneg %p69
        %p270 = pneg %p66
        %p271 = pneg %p90
        %p272 = pneg %p87
        %p273 = pneg %p111
        %p274 = pneg %p108
        %p275 = pneg %p137
        %p276 = pneg %p134
        %s277 = sand.u32 %s124, 1
        %s278 = scalar_lea.sflag [#allocation6], %s277
        %s279 = sand.u32 %s124, 1
        %s280 = smul.addr %s279, 32
        %s281 = scalar_lea.vmem [#allocation10], %s280
        %p282 = pneg %p163
        %p283 = pneg %p160
        %s284 = sand.u32 %s150, 1
        %s285 = scalar_lea.sflag [#allocation12], %s284
        %s286 = sand.u32 %s150, 1
        %s287 = smul.addr %s286, 32
        %s288 = scalar_lea.vmem [#allocation11], %s287
        %s289 = smul.u32 4, %s27
        %s290 = smul.u32 4, %s27
        %s291 = smul.u32 4, %s27
        %p292 = scmp.eq.s32.totalorder %s27, 0
        // Predicated region
        $region49: #{tpu_custom_call.1} parent=35 // pred_check
          %p293 = pneg %p292
        $region50: #{tpu_custom_call.1} parent=35 // pred_check_branch
          %295 = sbr.rel (%p293) target = $region52
        $region51: #{tpu_custom_call.1} parent=35 // pred_region
          %296 = vst [vmem:[#allocation2] sm:$0xff] 0.0
          %297 = vst [vmem:[#allocation3] sm:$0xff] 0.0
        $region52: #{tpu_custom_call.1} parent=35 // pred_fallthru
          _
        %v298 = vld [vmem:[#allocation7] sm:$0xff]
        %v299 = vld [vmem:[#allocation7 + $0x8] sm:$0xff]
        %v300 = vld [vmem:[#allocation7 + $0x10] sm:$0xff]
        %v301 = vld [vmem:[#allocation7 + $0x18] sm:$0xff]
        %v302 = vld [vmem:[#allocation7 + $0x20] sm:$0xff]
        %v303 = vld [vmem:[#allocation7 + $0x28] sm:$0xff]
        %v304 = vld [vmem:[#allocation7 + $0x30] sm:$0xff]
        %v305 = vld [vmem:[#allocation7 + $0x38] sm:$0xff]
        %v306 = vld [vmem:[#allocation7 + $0x40] sm:$0xff]
        %v307 = vld [vmem:[#allocation7 + $0x48] sm:$0xff]
        %v308 = vld [vmem:[#allocation7 + $0x50] sm:$0xff]
        %v309 = vld [vmem:[#allocation7 + $0x58] sm:$0xff]
        %v310 = vld [vmem:[#allocation7 + $0x60] sm:$0xff]
        %v311 = vld [vmem:[#allocation7 + $0x68] sm:$0xff]
        %v312 = vld [vmem:[#allocation7 + $0x70] sm:$0xff]
        %v313 = vld [vmem:[#allocation7 + $0x78] sm:$0xff]
        %v314 = vld [vmem:[#allocation3] sm:$0xff]
        %v315 = vld [vmem:[%s246] sm:$0xff]
        %316 = vmatpush.msra.mxu0 %v313
        %317 = vmatpush.msra.mxu0 %v312
        %318 = vmatpush.msra.mxu0 %v311
        %319 = vmatpush.msra.mxu0 %v310
        %320 = vmatpush.msra.mxu0 %v309
        %321 = vmatpush.msra.mxu0 %v308
        %322 = vmatpush.msra.mxu0 %v307
        %323 = vmatpush.msra.mxu0 %v306
        %324 = vmatpush.msra.mxu0 %v305
        %325 = vmatpush.msra.mxu0 %v304
        %326 = vmatpush.msra.mxu0 %v303
        %327 = vmatpush.msra.mxu0 %v302
        %328 = vmatpush.msra.mxu0 %v301
        %329 = vmatpush.msra.mxu0 %v300
        %330 = vmatpush.msra.mxu0 %v299
        %331 = vmatpush.msra.mxu0 %v298
        %332 = vmatmul.f32.gmra.mxu0 %v314
        %v333 = vpop.f32.mrf.mxu0
        %v334 = vadd.f32 0.0, %v333
        %335 = vdwg.mxu0
        %v336 = vadd.f32 %v315, %v334
        %v337 = vmax.f32 %v336, 0.0
        %338 = vst [vmem:[%s288] sm:$0xff] %v337
        %s339 = scalar_lea.vmem %s246, 8 [#allocation4]
        %v340 = vld [vmem:[%s339] sm:$0xff]
        %341 = vmatpush.msra.mxu0 %v313
        %342 = vmatpush.msra.mxu0 %v312
        %343 = vmatpush.msra.mxu0 %v311
        %344 = vmatpush.msra.mxu0 %v310
        %345 = vmatpush.msra.mxu0 %v309
        %346 = vmatpush.msra.mxu0 %v308
        %347 = vmatpush.msra.mxu0 %v307
        %348 = vmatpush.msra.mxu0 %v306
        %349 = vmatpush.msra.mxu0 %v305
        %350 = vmatpush.msra.mxu0 %v304
        %351 = vmatpush.msra.mxu0 %v303
        %352 = vmatpush.msra.mxu0 %v302
        %353 = vmatpush.msra.mxu0 %v301
        %354 = vmatpush.msra.mxu0 %v300
        %355 = vmatpush.msra.mxu0 %v299
        %356 = vmatpush.msra.mxu0 %v298
        %357 = vmatmul.f32.gmra.mxu0 %v337
        %v358 = vpop.f32.mrf.mxu0
        %v359 = vadd.f32 0.0, %v358
        %360 = vdwg.mxu0
        %v361 = vadd.f32 %v340, %v359
        %v362 = vmax.f32 %v361, 0.0
        %s363 = scalar_lea.vmem %s288, 8 [#allocation11]
        %364 = vst [vmem:[%s363] sm:$0xff] %v362
        %s365 = scalar_lea.vmem %s246, 16 [#allocation4]
        %v366 = vld [vmem:[%s365] sm:$0xff]
        %367 = vmatpush.msra.mxu0 %v313
        %368 = vmatpush.msra.mxu0 %v312
        %369 = vmatpush.msra.mxu0 %v311
        %370 = vmatpush.msra.mxu0 %v310
        %371 = vmatpush.msra.mxu0 %v309
        %372 = vmatpush.msra.mxu0 %v308
        %373 = vmatpush.msra.mxu0 %v307
        %374 = vmatpush.msra.mxu0 %v306
        %375 = vmatpush.msra.mxu0 %v305
        %376 = vmatpush.msra.mxu0 %v304
        %377 = vmatpush.msra.mxu0 %v303
        %378 = vmatpush.msra.mxu0 %v302
        %379 = vmatpush.msra.mxu0 %v301
        %380 = vmatpush.msra.mxu0 %v300
        %381 = vmatpush.msra.mxu0 %v299
        %382 = vmatpush.msra.mxu0 %v298
        %383 = vmatmul.f32.gmra.mxu0 %v362
        %v384 = vpop.f32.mrf.mxu0
        %v385 = vadd.f32 0.0, %v384
        %386 = vdwg.mxu0
        %v387 = vadd.f32 %v366, %v385
        %v388 = vmax.f32 %v387, 0.0
        %s389 = scalar_lea.vmem %s288, 16 [#allocation11]
        %390 = vst [vmem:[%s389] sm:$0xff] %v388
        %s391 = scalar_lea.vmem %s246, 24 [#allocation4]
        %v392 = vld [vmem:[%s391] sm:$0xff]
        %393 = vmatpush.msra.mxu0 %v313
        %394 = vmatpush.msra.mxu0 %v312
        %395 = vmatpush.msra.mxu0 %v311
        %396 = vmatpush.msra.mxu0 %v310
        %397 = vmatpush.msra.mxu0 %v309
        %398 = vmatpush.msra.mxu0 %v308
        %399 = vmatpush.msra.mxu0 %v307
        %400 = vmatpush.msra.mxu0 %v306
        %401 = vmatpush.msra.mxu0 %v305
        %402 = vmatpush.msra.mxu0 %v304
        %403 = vmatpush.msra.mxu0 %v303
        %404 = vmatpush.msra.mxu0 %v302
        %405 = vmatpush.msra.mxu0 %v301
        %406 = vmatpush.msra.mxu0 %v300
        %407 = vmatpush.msra.mxu0 %v299
        %408 = vmatpush.msra.mxu0 %v298
        %409 = vmatmul.f32.gmra.mxu0 %v388
        %v410 = vpop.f32.mrf.mxu0
        %v411 = vadd.f32 0.0, %v410
        %412 = vdwg.mxu0
        %v413 = vadd.f32 %v392, %v411
        %v414 = vmax.f32 %v413, 0.0
        %s415 = scalar_lea.vmem %s288, 24 [#allocation11]
        %416 = vst [vmem:[%s415] sm:$0xff] %v414
        %417 = vst [vmem:[#allocation2] sm:$0xff] %v413
        %418 = vst [vmem:[#allocation3] sm:$0xff] %v414
        %v419 = vld [vmem:[%s288] sm:$0xff]
        %v420 = vld [vmem:[%s288 + $0x8] sm:$0xff]
        %v421 = vld [vmem:[%s288 + $0x10] sm:$0xff]
        %v422 = vld [vmem:[%s288 + $0x18] sm:$0xff]
        %v423 = vld [vmem:[#allocation9] sm:$0xff]
        %v424 = vld [vmem:[#allocation9 + $0x8] sm:$0xff]
        %v425 = vld [vmem:[#allocation9 + $0x10] sm:$0xff]
        %v426 = vld [vmem:[#allocation9 + $0x18] sm:$0xff]
        %v427 = vld [vmem:[#allocation9 + $0x20] sm:$0xff]
        %v428 = vld [vmem:[#allocation9 + $0x28] sm:$0xff]
        %v429 = vld [vmem:[#allocation9 + $0x30] sm:$0xff]
        %v430 = vld [vmem:[#allocation9 + $0x38] sm:$0xff]
        %v431 = vld [vmem:[#allocation9 + $0x40] sm:$0xff]
        %v432 = vld [vmem:[#allocation9 + $0x48] sm:$0xff]
        %v433 = vld [vmem:[#allocation9 + $0x50] sm:$0xff]
        %v434 = vld [vmem:[#allocation9 + $0x58] sm:$0xff]
        %v435 = vld [vmem:[#allocation9 + $0x60] sm:$0xff]
        %v436 = vld [vmem:[#allocation9 + $0x68] sm:$0xff]
        %v437 = vld [vmem:[#allocation9 + $0x70] sm:$0xff]
        %v438 = vld [vmem:[#allocation9 + $0x78] sm:$0xff]
        %v439 = vld [vmem:[%s3] sm:$0x1]
        %v441 = vperm.slane %v439, 0
        %443 = vmatpush.msra.mxu0 %v438
        %444 = vmatpush.msra.mxu0 %v437
        %445 = vmatpush.msra.mxu0 %v436
        %446 = vmatpush.msra.mxu0 %v435
        %447 = vmatpush.msra.mxu0 %v434
        %448 = vmatpush.msra.mxu0 %v433
        %449 = vmatpush.msra.mxu0 %v432
        %450 = vmatpush.msra.mxu0 %v431
        %451 = vmatpush.msra.mxu0 %v430
        %452 = vmatpush.msra.mxu0 %v429
        %453 = vmatpush.msra.mxu0 %v428
        %454 = vmatpush.msra.mxu0 %v427
        %455 = vmatpush.msra.mxu0 %v426
        %456 = vmatpush.msra.mxu0 %v425
        %457 = vmatpush.msra.mxu0 %v424
        %458 = vmatpush.msra.mxu0 %v423
        %459 = vmatmul.f32.gmra.mxu0 %v419
        %v460 = vpop.f32.mrf.mxu0
        %v461 = vadd.f32 %v441, %v460
        %462 = vmatmul.f32.gmra.mxu0 %v420
        %v463 = vpop.f32.mrf.mxu0
        %v464 = vadd.f32 %v441, %v463
        %465 = vmatmul.f32.gmra.mxu0 %v421
        %v466 = vpop.f32.mrf.mxu0
        %v467 = vadd.f32 %v441, %v466
        %468 = vmatmul.f32.gmra.mxu0 %v422
        %v469 = vpop.f32.mrf.mxu0
        %v470 = vadd.f32 %v441, %v469
        %471 = vdwg.mxu0
        %472 = vst [vmem:[%s281] sm:$0xff] %v461
        %473 = vst [vmem:[%s281 + $0x8] sm:$0xff] %v464
        %474 = vst [vmem:[%s281 + $0x10] sm:$0xff] %v467
        %475 = vst [vmem:[%s281 + $0x18] sm:$0xff] %v470
        %s476 = sand.u32 %s124, 1
        %s477 = scalar_lea.sflag [#allocation6], %s476
        %s478 = sand.u32 %s124, 1
        %s479 = smul.addr %s478, 32
        %s480 = scalar_lea.vmem [#allocation10], %s479
        %s481 = sand.u32 %s150, 1
        %s482 = scalar_lea.sflag [#allocation12], %s481
        %s483 = sand.u32 %s150, 1
        %s484 = smul.addr %s483, 32
        %s485 = scalar_lea.vmem [#allocation11], %s484
        // Predicated region
        $region53: #{tpu_custom_call.1} parent=35 // pred_check
          %p486 = pneg %p134
        $region54: #{tpu_custom_call.1} parent=35 // pred_check_branch
          %488 = sbr.rel (%p486) target = $region56
        $region55: #{tpu_custom_call.1} parent=35 // pred_region
          %s489 = smul.u32 4, %s27
          %491 = vsyncadd %s477, 0
          %s492 = smul.addr %s489, 8
          %s493 = scalar_lea.hbm %s4, %s492
          %s494 = sshll.u32 %s480, 4
          %s495 = int_to_ptr.vmem [resolvable:$true] %s494
          %s496 = sshll.u32 %s493, 4
          %s497 = int_to_ptr.hbm [resolvable:$true] %s496
          %502 = dma.vmem_to_hbm [thread:$0]  %s495, 512, %s497, %s477, 128, 128, 8
        $region56: #{tpu_custom_call.1} parent=35 // pred_fallthru
          _
        // Predicated region
        $region57: #{tpu_custom_call.1} parent=35 // pred_check
          %p503 = pneg %p160
        $region58: #{tpu_custom_call.1} parent=35 // pred_check_branch
          %505 = sbr.rel (%p503) target = $region60
        $region59: #{tpu_custom_call.1} parent=35 // pred_region
          %s506 = smul.u32 4, %s27
          %508 = vsyncadd %s482, 0
          %s509 = smul.addr %s506, 8
          %s510 = scalar_lea.hbm %s5, %s509
          %s511 = sshll.u32 %s485, 4
          %s512 = int_to_ptr.vmem [resolvable:$true] %s511
          %s513 = sshll.u32 %s510, 4
          %s514 = int_to_ptr.hbm [resolvable:$true] %s513
          %519 = dma.vmem_to_hbm [thread:$0]  %s512, 512, %s514, %s482, 128, 128, 8
        $region60: #{tpu_custom_call.1} parent=35 // pred_fallthru
          _
      $region36: #{tpu_custom_call.1} parent=5 // pred_fallthru
        _
      %p520 = scmp.le.s32.totalorder 2, %s22
      // Predicated region
      $region61: #{tpu_custom_call.1} parent=5 // pred_check
        %p521 = pneg %p520
      $region62: #{tpu_custom_call.1} parent=5 // pred_check_branch
        %523 = sbr.rel (%p521) target = $region64
      $region63: #{tpu_custom_call.1} parent=5 // pred_region
        %s524 = ssub.s32 %s22, 2
        // Predicated region
        $region65: #{tpu_custom_call.1} parent=63 // pred_check
          %p525 = pneg %p140
        $region66: #{tpu_custom_call.1} parent=63 // pred_check_branch
          %527 = sbr.rel (%p525) target = $region68
        $region67: #{tpu_custom_call.1} parent=63 // pred_region
          %s528 = sand.u32 %s125, 1
          %s529 = scalar_lea.sflag [#allocation6], %s528
          %s530 = sand.u32 %s125, 1
          %s531 = smul.addr %s530, 32
          %s532 = scalar_lea.vmem [#allocation10], %s531
          %534 = dma.done %s529, 512
        $region68: #{tpu_custom_call.1} parent=63 // pred_fallthru
          _
        // Predicated region
        $region69: #{tpu_custom_call.1} parent=63 // pred_check
          %p535 = pneg %p166
        $region70: #{tpu_custom_call.1} parent=63 // pred_check_branch
          %537 = sbr.rel (%p535) target = $region72
        $region71: #{tpu_custom_call.1} parent=63 // pred_region
          %s538 = sand.u32 %s151, 1
          %s539 = scalar_lea.sflag [#allocation12], %s538
          %s540 = sand.u32 %s151, 1
          %s541 = smul.addr %s540, 32
          %s542 = scalar_lea.vmem [#allocation11], %s541
          %544 = dma.done %s539, 512
        $region72: #{tpu_custom_call.1} parent=63 // pred_fallthru
          _
      $region64: #{tpu_custom_call.1} parent=5 // pred_fallthru
        _
    $region6: #{tpu_custom_call.1} parent=1 // loop_footer
      %s26 = sadd.s32 1, %s22
    $region7: #{tpu_custom_call.1} parent=1 // loop_footer_branch
      %21 = sbr.rel target = $region3
    $region8: #{tpu_custom_call.1} parent=1 // loop_exit
      _
    %545 = vsyncpa [#allocation5], 1
    %s546 = scalar_lea.sflag [#allocation5], 1
    %547 = vsyncpa %s546, 1
    %548 = vsyncpa [#allocation8], 1
    %549 = vsyncpa [#allocation6], 1
    %s550 = scalar_lea.sflag [#allocation6], 1
    %551 = vsyncpa %s550, 1
    %552 = vsyncpa [#allocation12], 1
    %s553 = scalar_lea.sflag [#allocation12], 1
    %554 = vsyncpa %s553, 1

</llo_original>
